<compile_context>
chip_gen: v7x
topology: tpu7x:2x2x1
jax: 0.10.0
libtpu: 0.0.40
codegen_flags: <defaults>
</compile_context>

<pallas_src>
import math
import numpy as np
import jax
import jax.numpy as jnp
from jax.experimental import pallas as pl
from jax.experimental.pallas import tpu as pltpu


def _select_attention_kernel(q_ref, k_ref, wq_ref, wk_ref, r_ref, out_ref):
    # q_ref  : (TB, num_read  * d_read)      bf16
    # k_ref  : (TB, num_write * d_write)     bf16
    # wq_ref : (num_read  * d_read,  P * d_k)  bf16, block-diag proj folded w/ pair expansion
    # wk_ref : (num_write * d_write, P * d_k)  bf16
    # r_ref  : (P * d_k, P_pad)              bf16, per-pair d_k reduction, 1/sqrt(d_k) folded in
    # out_ref: (TB, P_pad)                   f32, P_pad = 128-lane padded num_read*num_write
    re = jnp.dot(q_ref[...], wq_ref[...], preferred_element_type=jnp.float32)
    we = jnp.dot(k_ref[...], wk_ref[...], preferred_element_type=jnp.float32)
    prod = (re * we).astype(jnp.bfloat16)
    out_ref[...] = jnp.dot(prod, r_ref[...],
                           preferred_element_type=jnp.float32).astype(out_ref.dtype)


def _build_constants(wq, wk, d_k, p_pad):
    """Precompute (in plain XLA, outside the kernel) the fused constant matrices (bf16)."""
    num_read, d_read, _ = wq.shape
    num_write, d_write, _ = wk.shape
    P = num_read * num_write

    wq = wq.astype(jnp.float32)
    wk = wk.astype(jnp.float32)

    # Block-diagonal grouped-projection matrices:
    #   wq_bd[i*d_read + d, j*d_k + k] = (i == j) * wq[i, d, k]
    wq_bd = jnp.einsum('ij,idk->idjk', jnp.eye(num_read, dtype=jnp.float32), wq
                       ).reshape(num_read * d_read, num_read * d_k)
    wk_bd = jnp.einsum('ij,idk->idjk', jnp.eye(num_write, dtype=jnp.float32), wk
                       ).reshape(num_write * d_write, num_write * d_k)

    # 0/1 expansion / reduction matrices for the per-batch bmm:
    #   read_expand[b, (i*n_w+j)*d_k + k]  = read[b, i*d_k + k]
    #   write_expand[b, (i*n_w+j)*d_k + k] = write[b, j*d_k + k]
    #   scores[b, i*n_w+j] = sum_k read_expand * write_expand
    e_r = np.zeros((num_read * d_k, P * d_k), np.float32)
    e_w = np.zeros((num_write * d_k, P * d_k), np.float32)
    red = np.zeros((P * d_k, p_pad), np.float32)    # lane-padded output columns
    for i in range(num_read):
        for j in range(num_write):
            p = i * num_write + j
            for kk in range(d_k):
                e_r[i * d_k + kk, p * d_k + kk] = 1.0
                e_w[j * d_k + kk, p * d_k + kk] = 1.0
                red[p * d_k + kk, p] = 1.0

    inv_temp = 1.0 / math.sqrt(d_k)
    wq_exp = (wq_bd @ jnp.asarray(e_r)).astype(jnp.bfloat16)   # (n_r*d_read, P*d_k)
    wk_exp = (wk_bd @ jnp.asarray(e_w)).astype(jnp.bfloat16)   # (n_w*d_write, P*d_k)
    r_scaled = jnp.asarray(red * inv_temp).astype(jnp.bfloat16)  # (P*d_k, p_pad)
    return wq_exp, wk_exp, r_scaled


def _batch_tile(B, max_batch_tile):
    """bf16-friendly batch tile: multiple of 16, >=2 grid steps when B is large
    (so the parallel axis can be split across v7x's two TensorCores), and a
    multiple of 256 in the large-batch path so MXU row tiles stay full."""
    if B <= 16:
        return 16
    half = (B + 1) // 2                      # aim for at least 2 grid steps
    tb = ((half + 15) // 16) * 16
    tb = min(tb, max_batch_tile)
    if tb >= 256:
        tb = (tb // 256) * 256
    return tb


def select_attention(q, k, wq, wk, *, max_batch_tile=2048):
    """q: (B, num_read, d_read), k: (B, num_write, d_write),
       wq: (num_read, d_read, d_k), wk: (num_write, d_write, d_k).
       Returns (B, num_read, num_write) float32."""
    B, num_read, d_read = q.shape
    _, num_write, d_write = k.shape
    d_k = wq.shape[-1]
    assert wq.shape == (num_read, d_read, d_k)
    assert wk.shape == (num_write, d_write, d_k)
    P = num_read * num_write
    p_pad = pl.cdiv(P, 128) * 128            # lane-dense output slab (unmasked vst)

    wq_exp, wk_exp, r_scaled = _build_constants(wq, wk, d_k, p_pad)

    # bf16 activations for the MXU; accumulation stays f32 inside the kernel.
    q_flat = q.reshape(B, num_read * d_read).astype(jnp.bfloat16)
    k_flat = k.reshape(B, num_write * d_write).astype(jnp.bfloat16)

    tb = _batch_tile(B, max_batch_tile)
    b_pad = pl.cdiv(B, tb) * tb
    if b_pad != B:
        q_flat = jnp.pad(q_flat, ((0, b_pad - B), (0, 0)))
        k_flat = jnp.pad(k_flat, ((0, b_pad - B), (0, 0)))

    grid = (b_pad // tb,)

    const_buf = pl.Buffered(1)               # grid-invariant constants: no double-buffering

    out_flat = pl.pallas_call(
        _select_attention_kernel,
        out_shape=jax.ShapeDtypeStruct((b_pad, p_pad), jnp.float32),
        grid_spec=pltpu.PrefetchScalarGridSpec(
            num_scalar_prefetch=0,
            grid=grid,
            in_specs=[
                # per-step batch tiles of flattened q and k (rows -> MXU sublanes)
                pl.BlockSpec((tb, num_read * d_read), lambda b: (b, 0)),
                pl.BlockSpec((tb, num_write * d_write), lambda b: (b, 0)),
                # constant (grid-invariant) fused weight matrices, single-buffered
                pl.BlockSpec((num_read * d_read, P * d_k), lambda b: (0, 0),
                             pipeline_mode=const_buf),
                pl.BlockSpec((num_write * d_write, P * d_k), lambda b: (0, 0),
                             pipeline_mode=const_buf),
                pl.BlockSpec((P * d_k, p_pad), lambda b: (0, 0),
                             pipeline_mode=const_buf),
            ],
            out_specs=pl.BlockSpec((tb, p_pad), lambda b: (b, 0)),
        ),
        compiler_params=pltpu.CompilerParams(
            dimension_semantics=("parallel",),
            vmem_limit_bytes=48 * 1024 * 1024),
    )(q_flat, k_flat, wq_exp, wk_exp, r_scaled)

    return out_flat[:B, :P].reshape(B, num_read, num_write)


def select_attention_ref(q, k, wq, wk):
    d_k = wq.shape[-1]
    read = jnp.einsum('bnd,ndk->bnk', q, wq)
    write = jnp.einsum('bmd,mdk->bmk', k, wk)
    return jnp.einsum('bnk,bmk->bnm', read, write) / math.sqrt(d_k)


def _check(out, ref, tag):
    # bf16 inputs / intermediates: allow ~2% relative error on the score scale.
    err = float(jnp.max(jnp.abs(out - ref)))
    scale = float(jnp.max(jnp.abs(ref))) + 1e-12
    assert err <= 2e-2 * scale + 1e-4, f"mismatch vs reference ({tag}): err={err}, scale={scale}"


if __name__ == "__main__":
    # Shapes consistent with the module defaults:
    #   d_read = d_write = 32, d_k = 16, num_read = num_write = 5, batch = 2
    B, num_read, num_write = 2, 5, 5
    d_read, d_write, d_k = 32, 32, 16

    key = jax.random.PRNGKey(0)
    kq, kk_, kwq, kwk = jax.random.split(key, 4)

    q = jax.random.normal(kq, (B, num_read, d_read), dtype=jnp.float32)
    k = jax.random.normal(kk_, (B, num_write, d_write), dtype=jnp.float32)
    # GroupLinearLayer init: 0.01 * randn(num_blocks, din, dout), no bias
    wq = 0.01 * jax.random.normal(kwq, (num_read, d_read, d_k), dtype=jnp.float32)
    wk = 0.01 * jax.random.normal(kwk, (num_write, d_write, d_k), dtype=jnp.float32)

    out = jax.block_until_ready(select_attention(q, k, wq, wk))
    ref = select_attention_ref(q, k, wq, wk)
    assert out.shape == (B, num_read, num_write)
    _check(out, ref, "B=2")

    # Secondary check: multi-step grid + batch padding path (tb=16, 2 grid steps).
    B2 = 20
    kq2, kk2 = jax.random.split(jax.random.PRNGKey(1), 2)
    q2 = jax.random.normal(kq2, (B2, num_read, d_read), dtype=jnp.float32)
    k2 = jax.random.normal(kk2, (B2, num_write, d_write), dtype=jnp.float32)
    out2 = jax.block_until_ready(select_attention(q2, k2, wq, wk))
    ref2 = select_attention_ref(q2, k2, wq, wk)
    _check(out2, ref2, "B=20")

    print("KERNEL_OK")
</pallas_src>

<mosaic_0001>
module attributes {stable_mosaic.version = 11 : i64} {
  func.func @_select_attention_kernel(%arg0: i32, %arg1: memref<16x160xbf16, #tpu.memory_space<vmem>>, %arg2: memref<16x160xbf16, #tpu.memory_space<vmem>>, %arg3: memref<160x400xbf16, #tpu.memory_space<vmem>>, %arg4: memref<160x400xbf16, #tpu.memory_space<vmem>>, %arg5: memref<400x128xbf16, #tpu.memory_space<vmem>>, %arg6: memref<16x128xf32, #tpu.memory_space<vmem>>) attributes {dimension_semantics = [#tpu.dimension_semantics<parallel>], iteration_bounds = array<i64: 1>, scalar_prefetch = 0 : i64, scratch_operands = 0 : i64, tpu.core_type = #tpu.core_type<tc>, window_params = [{transform_indices = @transform_0, window_bounds = array<i64: 16, 160>}, {transform_indices = @transform_1, window_bounds = array<i64: 16, 160>}, {pipeline_mode = #tpu.pipeline_mode<synchronous>, transform_indices = @transform_2, window_bounds = array<i64: 160, 400>}, {pipeline_mode = #tpu.pipeline_mode<synchronous>, transform_indices = @transform_3, window_bounds = array<i64: 160, 400>}, {pipeline_mode = #tpu.pipeline_mode<synchronous>, transform_indices = @transform_4, window_bounds = array<i64: 400, 128>}, {transform_indices = @transform_5, window_bounds = array<i64: 16, 128>}]} {
    %c0 = arith.constant 0 : index
    %c0_0 = arith.constant 0 : index
    %0 = vector.load %arg1[%c0, %c0_0] : memref<16x160xbf16, #tpu.memory_space<vmem>>, vector<16x160xbf16>
    %c0_1 = arith.constant 0 : index
    %c0_2 = arith.constant 0 : index
    %1 = vector.load %arg3[%c0_1, %c0_2] : memref<160x400xbf16, #tpu.memory_space<vmem>>, vector<160x400xbf16>
    %cst = arith.constant dense<0.000000e+00> : vector<16x400xf32>
    %2 = tpu.matmul %0, %1, %cst {dimension_numbers = #tpu.dot_dimension_numbers<[1], [0], [0], [1], [0, 0, 1, 1], [], []>} : vector<16x160xbf16>, vector<160x400xbf16>, vector<16x400xf32> -> vector<16x400xf32>
    %c0_3 = arith.constant 0 : index
    %c0_4 = arith.constant 0 : index
    %3 = vector.load %arg2[%c0_3, %c0_4] : memref<16x160xbf16, #tpu.memory_space<vmem>>, vector<16x160xbf16>
    %c0_5 = arith.constant 0 : index
    %c0_6 = arith.constant 0 : index
    %4 = vector.load %arg4[%c0_5, %c0_6] : memref<160x400xbf16, #tpu.memory_space<vmem>>, vector<160x400xbf16>
    %cst_7 = arith.constant dense<0.000000e+00> : vector<16x400xf32>
    %5 = tpu.matmul %3, %4, %cst_7 {dimension_numbers = #tpu.dot_dimension_numbers<[1], [0], [0], [1], [0, 0, 1, 1], [], []>} : vector<16x160xbf16>, vector<160x400xbf16>, vector<16x400xf32> -> vector<16x400xf32>
    %6 = arith.mulf %2, %5 : vector<16x400xf32>
    %7 = arith.truncf %6 : vector<16x400xf32> to vector<16x400xbf16>
    %c0_8 = arith.constant 0 : index
    %c0_9 = arith.constant 0 : index
    %8 = vector.load %arg5[%c0_8, %c0_9] : memref<400x128xbf16, #tpu.memory_space<vmem>>, vector<400x128xbf16>
    %cst_10 = arith.constant dense<0.000000e+00> : vector<16x128xf32>
    %9 = tpu.matmul %7, %8, %cst_10 {dimension_numbers = #tpu.dot_dimension_numbers<[1], [0], [0], [1], [0, 0, 1, 1], [], []>} : vector<16x400xbf16>, vector<400x128xbf16>, vector<16x128xf32> -> vector<16x128xf32>
    %c0_11 = arith.constant 0 : index
    %c0_12 = arith.constant 0 : index
    %10 = vector.load %arg6[%c0_11, %c0_12] : memref<16x128xf32, #tpu.memory_space<vmem>>, vector<16x128xf32>
    tpu.vector_store %arg6[%c0_11, %c0_12], %9 {strides = array<i32>} : memref<16x128xf32, #tpu.memory_space<vmem>>, vector<16x128xf32>,
    return
  }
  func.func @transform_0(%arg0: i32) -> (i32, i32) {
    %c0_i32 = arith.constant 0 : i32
    %c0_i32_0 = arith.constant 0 : i32
    return %arg0, %c0_i32 : i32, i32
  }
  func.func @transform_1(%arg0: i32) -> (i32, i32) {
    %c0_i32 = arith.constant 0 : i32
    %c0_i32_0 = arith.constant 0 : i32
    return %arg0, %c0_i32 : i32, i32
  }
  func.func @transform_2(%arg0: i32) -> (i32, i32) {
    %c0_i32 = arith.constant 0 : i32
    %c0_i32_0 = arith.constant 0 : i32
    %c0_i32_1 = arith.constant 0 : i32
    return %c0_i32, %c0_i32_0 : i32, i32
  }
  func.func @transform_3(%arg0: i32) -> (i32, i32) {
    %c0_i32 = arith.constant 0 : i32
    %c0_i32_0 = arith.constant 0 : i32
    %c0_i32_1 = arith.constant 0 : i32
    return %c0_i32, %c0_i32_0 : i32, i32
  }
  func.func @transform_4(%arg0: i32) -> (i32, i32) {
    %c0_i32 = arith.constant 0 : i32
    %c0_i32_0 = arith.constant 0 : i32
    %c0_i32_1 = arith.constant 0 : i32
    return %c0_i32, %c0_i32_0 : i32, i32
  }
  func.func @transform_5(%arg0: i32) -> (i32, i32) {
    %c0_i32 = arith.constant 0 : i32
    %c0_i32_0 = arith.constant 0 : i32
    return %arg0, %c0_i32 : i32, i32
  }
}

</mosaic_0001>

<llo_original>
// kernel: tpu_custom_call.1
$region0: #{tpu_custom_call.1}
  #allocation0 [shape = 'u32[]', space=smem, size = 0x4, offset = 0x4, fixed_abs, tag = 'smem constant byte address 0x4 - core index']
  #allocation1 [shape = 'u32[144,128]{1,0:T(1,128)}', space=vmem, size = 0x12000, scoped, tag = 'internal scratch']
  %s0 = inlined_call_operand.hbm [shape: bf16[16,160], index: 0, kind: input, shape index: {}]
  %s1 = inlined_call_operand.hbm [shape: bf16[16,160], index: 1, kind: input, shape index: {}]
  %s2 = inlined_call_operand.hbm [shape: bf16[160,400], index: 2, kind: input, shape index: {}]
  %s3 = inlined_call_operand.hbm [shape: bf16[160,400], index: 3, kind: input, shape index: {}]
  %s4 = inlined_call_operand.hbm [shape: bf16[400,128], index: 4, kind: input, shape index: {}]
  %s5 = inlined_call_operand.hbm [shape: f32[16,128], index: 5, kind: output, shape index: {}]
  %s6 = sld [smem:[#allocation0]]
  $region50: #{tpu_custom_call.1} parent=0
    _
  %s8 = ssub.s32 1, %s6
  %s9 = scalar_select 0, %s8, %s6
  $region1: #{tpu_custom_call.1} parent=0
    #allocation2 [shape = 'u8[8192]{0}', space=vmem, size = 0x2000, scoped, tag = 'input window, operand 0, single buffered']
    #allocation3 [shape = 's32[1]{0}', space=sflag, size = 0x4, scoped, tag = 'scoped memory for tpu_custom_call.1']
    #allocation4 [shape = 's32[1]{0}', space=sflag, size = 0x4, scoped, tag = 'scoped memory for tpu_custom_call.1']
    #allocation5 [shape = 'u8[8192]{0}', space=vmem, size = 0x2000, scoped, tag = 'input window, operand 1, single buffered']
    #allocation6 [shape = 's32[1]{0}', space=sflag, size = 0x4, scoped, tag = 'scoped memory for tpu_custom_call.1']
    #allocation7 [shape = 'u8[163840]{0}', space=vmem, size = 0x28000, scoped, tag = 'input window, operand 2, single buffered']
    #allocation8 [shape = 'u8[163840]{0}', space=vmem, size = 0x28000, scoped, tag = 'input window, operand 3, single buffered']
    #allocation9 [shape = 's32[1]{0}', space=sflag, size = 0x4, scoped, tag = 'scoped memory for tpu_custom_call.1']
    #allocation10 [shape = 'u8[102400]{0}', space=vmem, size = 0x19000, scoped, tag = 'input window, operand 4, single buffered']
    #allocation11 [shape = 'u8[8192]{0}', space=vmem, size = 0x2000, scoped, tag = 'output window, operand 0, single buffered']
    %10 = vsyncpa [#allocation3], 0
    %11 = vsyncpa [#allocation6], 0
    %12 = vsyncpa [#allocation9], 0
    %13 = vsyncpa [#allocation4], 0
    // Predicated region
    $region2: #{tpu_custom_call.1} parent=1 // pred_check
      _
    $region3: #{tpu_custom_call.1} parent=1 // pred_check_branch
      %15 = sbr.rel (0) target = $region5
    $region4: #{tpu_custom_call.1} parent=1 // pred_region
      %s17 = ssub.s32 256, 256
      %18 = vsyncadd [#allocation3], %s17
      %s19 = sshll.u32 [#allocation2], 4
      %s20 = int_to_ptr.vmem [resolvable:$true] %s19
      %25 = dma.hbm_to_vmem [thread:$0]  %s0, 256, %s20, [#allocation3], 128, 128, 8
    $region5: #{tpu_custom_call.1} parent=1 // pred_fallthru
      _
    // Predicated region
    $region6: #{tpu_custom_call.1} parent=1 // pred_check
      _
    $region7: #{tpu_custom_call.1} parent=1 // pred_check_branch
      %27 = sbr.rel (0) target = $region9
    $region8: #{tpu_custom_call.1} parent=1 // pred_region
      %s29 = ssub.s32 256, 256
      %30 = vsyncadd [#allocation6], %s29
      %s31 = sshll.u32 [#allocation5], 4
      %s32 = int_to_ptr.vmem [resolvable:$true] %s31
      %37 = dma.hbm_to_vmem [thread:$0]  %s1, 256, %s32, [#allocation6], 128, 128, 8
    $region9: #{tpu_custom_call.1} parent=1 // pred_fallthru
      _
    // Predicated region
    $region10: #{tpu_custom_call.1} parent=1 // pred_check
      _
    $region11: #{tpu_custom_call.1} parent=1 // pred_check_branch
      %39 = sbr.rel (0) target = $region13
    $region12: #{tpu_custom_call.1} parent=1 // pred_region
      %s41 = ssub.s32 5120, 5120
      %42 = vsyncadd [#allocation6], %s41
      %s43 = sshll.u32 [#allocation7], 4
      %s44 = int_to_ptr.vmem [resolvable:$true] %s43
      %49 = dma.hbm_to_vmem [thread:$0]  %s2, 5120, %s44, [#allocation6], 256, 256, 16
    $region13: #{tpu_custom_call.1} parent=1 // pred_fallthru
      _
    // Predicated region
    $region14: #{tpu_custom_call.1} parent=1 // pred_check
      _
    $region15: #{tpu_custom_call.1} parent=1 // pred_check_branch
      %51 = sbr.rel (0) target = $region17
    $region16: #{tpu_custom_call.1} parent=1 // pred_region
      %s53 = ssub.s32 5120, 5120
      %54 = vsyncadd [#allocation9], %s53
      %s55 = sshll.u32 [#allocation8], 4
      %s56 = int_to_ptr.vmem [resolvable:$true] %s55
      %61 = dma.hbm_to_vmem [thread:$0]  %s3, 5120, %s56, [#allocation9], 256, 256, 16
    $region17: #{tpu_custom_call.1} parent=1 // pred_fallthru
      _
    // Predicated region
    $region18: #{tpu_custom_call.1} parent=1 // pred_check
      _
    $region19: #{tpu_custom_call.1} parent=1 // pred_check_branch
      %63 = sbr.rel (0) target = $region21
    $region20: #{tpu_custom_call.1} parent=1 // pred_region
      %s65 = ssub.s32 3200, 3200
      %66 = vsyncadd [#allocation9], %s65
      %s67 = sshll.u32 [#allocation10], 4
      %s68 = int_to_ptr.vmem [resolvable:$true] %s67
      %73 = dma.hbm_to_vmem [thread:$0]  %s4, 3200, %s68, [#allocation9], 64, 64, 4
    $region21: #{tpu_custom_call.1} parent=1 // pred_fallthru
      _
    // Predicated region
    $region22: #{tpu_custom_call.1} parent=1 // pred_check
      _
    $region23: #{tpu_custom_call.1} parent=1 // pred_check_branch
      %75 = sbr.rel (0) target = $region25
    $region24: #{tpu_custom_call.1} parent=1 // pred_region
      %76 = dma.done [#allocation3], 256
    $region25: #{tpu_custom_call.1} parent=1 // pred_fallthru
      _
    // Predicated region
    $region26: #{tpu_custom_call.1} parent=1 // pred_check
      _
    $region27: #{tpu_custom_call.1} parent=1 // pred_check_branch
      %78 = sbr.rel (0) target = $region29
    $region28: #{tpu_custom_call.1} parent=1 // pred_region
      %79 = dma.done [#allocation6], 256
    $region29: #{tpu_custom_call.1} parent=1 // pred_fallthru
      _
    // Predicated region
    $region30: #{tpu_custom_call.1} parent=1 // pred_check
      _
    $region31: #{tpu_custom_call.1} parent=1 // pred_check_branch
      %81 = sbr.rel (0) target = $region33
    $region32: #{tpu_custom_call.1} parent=1 // pred_region
      %82 = dma.done [#allocation6], 5120
    $region33: #{tpu_custom_call.1} parent=1 // pred_fallthru
      _
    // Predicated region
    $region34: #{tpu_custom_call.1} parent=1 // pred_check
      _
    $region35: #{tpu_custom_call.1} parent=1 // pred_check_branch
      %84 = sbr.rel (0) target = $region37
    $region36: #{tpu_custom_call.1} parent=1 // pred_region
      %85 = dma.done [#allocation9], 5120
    $region37: #{tpu_custom_call.1} parent=1 // pred_fallthru
      _
    // Predicated region
    $region38: #{tpu_custom_call.1} parent=1 // pred_check
      _
    $region39: #{tpu_custom_call.1} parent=1 // pred_check_branch
      %87 = sbr.rel (0) target = $region41
    $region40: #{tpu_custom_call.1} parent=1 // pred_region
      %88 = dma.done [#allocation9], 3200
    $region41: #{tpu_custom_call.1} parent=1 // pred_fallthru
      _
    %v90 = vld [vmem:[#allocation2] sm:$0xff]
    %v91 = vld [vmem:[#allocation2 + $0x8] sm:$0xff]
    %v92 = vld [vmem:[#allocation7] sm:$0xff]
    %v93 = vld [vmem:[#allocation7 + $0x8] sm:$0xff]
    %v94 = vld [vmem:[#allocation7 + $0x10] sm:$0xff]
    %v95 = vld [vmem:[#allocation7 + $0x18] sm:$0xff]
    %v96 = vld [vmem:[#allocation7 + $0x20] sm:$0xff]
    %v97 = vld [vmem:[#allocation7 + $0x28] sm:$0xff]
    %v98 = vld [vmem:[#allocation7 + $0x30] sm:$0xff]
    %v99 = vld [vmem:[#allocation7 + $0x38] sm:$0xff]
    %v100 = vld [vmem:[#allocation7 + $0x40] sm:$0xff]
    %v101 = vld [vmem:[#allocation7 + $0x48] sm:$0xff]
    %v102 = vld [vmem:[#allocation7 + $0x50] sm:$0xff]
    %v103 = vld [vmem:[#allocation7 + $0x58] sm:$0xff]
    %v104 = vld [vmem:[#allocation7 + $0x60] sm:$0xff]
    %v105 = vld [vmem:[#allocation7 + $0x68] sm:$0xff]
    %v106 = vld [vmem:[#allocation7 + $0x70] sm:$0xff]
    %v107 = vld [vmem:[#allocation7 + $0x78] sm:$0xff]
    %v108 = vld [vmem:[#allocation7 + $0x80] sm:$0xff]
    %v109 = vld [vmem:[#allocation7 + $0x88] sm:$0xff]
    %v110 = vld [vmem:[#allocation7 + $0x90] sm:$0xff]
    %v111 = vld [vmem:[#allocation7 + $0x98] sm:$0xff]
    %v112 = vld [vmem:[#allocation7 + $0xa0] sm:$0xff]
    %v113 = vld [vmem:[#allocation7 + $0xa8] sm:$0xff]
    %v114 = vld [vmem:[#allocation7 + $0xb0] sm:$0xff]
    %v115 = vld [vmem:[#allocation7 + $0xb8] sm:$0xff]
    %v116 = vld [vmem:[#allocation7 + $0xc0] sm:$0xff]
    %v117 = vld [vmem:[#allocation7 + $0xc8] sm:$0xff]
    %v118 = vld [vmem:[#allocation7 + $0xd0] sm:$0xff]
    %v119 = vld [vmem:[#allocation7 + $0xd8] sm:$0xff]
    %v120 = vld [vmem:[#allocation7 + $0xe0] sm:$0xff]
    %v121 = vld [vmem:[#allocation7 + $0xe8] sm:$0xff]
    %v122 = vld [vmem:[#allocation7 + $0xf0] sm:$0xff]
    %v123 = vld [vmem:[#allocation7 + $0xf8] sm:$0xff]
    %v124 = vld [vmem:[#allocation7 + $0x100] sm:$0xff]
    %v125 = vld [vmem:[#allocation7 + $0x108] sm:$0xff]
    %v126 = vld [vmem:[#allocation7 + $0x110] sm:$0xff]
    %v127 = vld [vmem:[#allocation7 + $0x118] sm:$0xff]
    %v128 = vld [vmem:[#allocation7 + $0x120] sm:$0xff]
    %v129 = vld [vmem:[#allocation7 + $0x128] sm:$0xff]
    %v130 = vld [vmem:[#allocation7 + $0x130] sm:$0xff]
    %v131 = vld [vmem:[#allocation7 + $0x138] sm:$0xff]
    %v134 = vunpack.c.l.b16 %v90
    %v135 = vunpack.c.h.b16 %v90
    %v136 = vunpack.c.l.b16 %v91
    %v137 = vunpack.c.h.b16 %v91
    %v138 = vpack.c.b16 %v136, %v134
    %v139 = vpack.c.b16 %v137, %v135
    %v181 = vunpack.c.l.b16 %v92
    %v182 = vunpack.c.h.b16 %v92
    %v183 = vunpack.c.l.b16 %v93
    %v184 = vunpack.c.h.b16 %v93
    %v185 = vunpack.c.l.b16 %v94
    %v186 = vunpack.c.h.b16 %v94
    %v187 = vunpack.c.l.b16 %v95
    %v188 = vunpack.c.h.b16 %v95
    %v189 = vunpack.c.l.b16 %v96
    %v190 = vunpack.c.h.b16 %v96
    %v191 = vunpack.c.l.b16 %v97
    %v192 = vunpack.c.h.b16 %v97
    %v193 = vunpack.c.l.b16 %v98
    %v194 = vunpack.c.h.b16 %v98
    %v195 = vunpack.c.l.b16 %v99
    %v196 = vunpack.c.h.b16 %v99
    %v197 = vunpack.c.l.b16 %v100
    %v198 = vunpack.c.h.b16 %v100
    %v199 = vunpack.c.l.b16 %v101
    %v200 = vunpack.c.h.b16 %v101
    %v201 = vunpack.c.l.b16 %v102
    %v202 = vunpack.c.h.b16 %v102
    %v203 = vunpack.c.l.b16 %v103
    %v204 = vunpack.c.h.b16 %v103
    %v205 = vunpack.c.l.b16 %v104
    %v206 = vunpack.c.h.b16 %v104
    %v207 = vunpack.c.l.b16 %v105
    %v208 = vunpack.c.h.b16 %v105
    %v209 = vunpack.c.l.b16 %v106
    %v210 = vunpack.c.h.b16 %v106
    %v211 = vunpack.c.l.b16 %v107
    %v212 = vunpack.c.h.b16 %v107
    %v213 = vunpack.c.l.b16 %v108
    %v214 = vunpack.c.h.b16 %v108
    %v215 = vunpack.c.l.b16 %v109
    %v216 = vunpack.c.h.b16 %v109
    %v217 = vunpack.c.l.b16 %v110
    %v218 = vunpack.c.h.b16 %v110
    %v219 = vunpack.c.l.b16 %v111
    %v220 = vunpack.c.h.b16 %v111
    %v221 = vunpack.c.l.b16 %v112
    %v222 = vunpack.c.h.b16 %v112
    %v223 = vunpack.c.l.b16 %v113
    %v224 = vunpack.c.h.b16 %v113
    %v225 = vunpack.c.l.b16 %v114
    %v226 = vunpack.c.h.b16 %v114
    %v227 = vunpack.c.l.b16 %v115
    %v228 = vunpack.c.h.b16 %v115
    %v229 = vunpack.c.l.b16 %v116
    %v230 = vunpack.c.h.b16 %v116
    %v231 = vunpack.c.l.b16 %v117
    %v232 = vunpack.c.h.b16 %v117
    %v233 = vunpack.c.l.b16 %v118
    %v234 = vunpack.c.h.b16 %v118
    %v235 = vunpack.c.l.b16 %v119
    %v236 = vunpack.c.h.b16 %v119
    %v237 = vunpack.c.l.b16 %v120
    %v238 = vunpack.c.h.b16 %v120
    %v239 = vunpack.c.l.b16 %v121
    %v240 = vunpack.c.h.b16 %v121
    %v241 = vunpack.c.l.b16 %v122
    %v242 = vunpack.c.h.b16 %v122
    %v243 = vunpack.c.l.b16 %v123
    %v244 = vunpack.c.h.b16 %v123
    %v245 = vunpack.c.l.b16 %v124
    %v246 = vunpack.c.h.b16 %v124
    %v247 = vunpack.c.l.b16 %v125
    %v248 = vunpack.c.h.b16 %v125
    %v249 = vunpack.c.l.b16 %v126
    %v250 = vunpack.c.h.b16 %v126
    %v251 = vunpack.c.l.b16 %v127
    %v252 = vunpack.c.h.b16 %v127
    %v253 = vunpack.c.l.b16 %v128
    %v254 = vunpack.c.h.b16 %v128
    %v255 = vunpack.c.l.b16 %v129
    %v256 = vunpack.c.h.b16 %v129
    %v257 = vunpack.c.l.b16 %v130
    %v258 = vunpack.c.h.b16 %v130
    %v259 = vunpack.c.l.b16 %v131
    %v260 = vunpack.c.h.b16 %v131
    %v261 = vpack.c.b16 %v185, %v181
    %v262 = vpack.c.b16 %v186, %v182
    %v263 = vpack.c.b16 %v187, %v183
    %v264 = vpack.c.b16 %v188, %v184
    %v265 = vpack.c.b16 %v193, %v189
    %v266 = vpack.c.b16 %v194, %v190
    %v267 = vpack.c.b16 %v195, %v191
    %v268 = vpack.c.b16 %v196, %v192
    %v269 = vpack.c.b16 %v201, %v197
    %v270 = vpack.c.b16 %v202, %v198
    %v271 = vpack.c.b16 %v203, %v199
    %v272 = vpack.c.b16 %v204, %v200
    %v273 = vpack.c.b16 %v209, %v205
    %v274 = vpack.c.b16 %v210, %v206
    %v275 = vpack.c.b16 %v211, %v207
    %v276 = vpack.c.b16 %v212, %v208
    %v277 = vpack.c.b16 %v217, %v213
    %v278 = vpack.c.b16 %v218, %v214
    %v279 = vpack.c.b16 %v219, %v215
    %v280 = vpack.c.b16 %v220, %v216
    %v281 = vpack.c.b16 %v225, %v221
    %v282 = vpack.c.b16 %v226, %v222
    %v283 = vpack.c.b16 %v227, %v223
    %v284 = vpack.c.b16 %v228, %v224
    %v285 = vpack.c.b16 %v233, %v229
    %v286 = vpack.c.b16 %v234, %v230
    %v287 = vpack.c.b16 %v235, %v231
    %v288 = vpack.c.b16 %v236, %v232
    %v289 = vpack.c.b16 %v241, %v237
    %v290 = vpack.c.b16 %v242, %v238
    %v291 = vpack.c.b16 %v243, %v239
    %v292 = vpack.c.b16 %v244, %v240
    %v293 = vpack.c.b16 %v249, %v245
    %v294 = vpack.c.b16 %v250, %v246
    %v295 = vpack.c.b16 %v251, %v247
    %v296 = vpack.c.b16 %v252, %v248
    %v297 = vpack.c.b16 %v257, %v253
    %v298 = vpack.c.b16 %v258, %v254
    %v299 = vpack.c.b16 %v259, %v255
    %v300 = vpack.c.b16 %v260, %v256
    %vm341 = vcmask 261120
    %v343 = vsel %vm341, %v139, 0
    %345 = vmatprep.subr.bf16.mxu0 %v262
    %346 = vmatpush1.bf16.msra.mxu0 %v261
    %347 = vmatprep.subr.bf16.mxu0 %v266
    %348 = vmatpush1.bf16.msra.mxu0 %v265
    %349 = vmatprep.subr.bf16.mxu0 %v270
    %350 = vmatpush1.bf16.msra.mxu0 %v269
    %351 = vmatprep.subr.bf16.mxu0 %v274
    %352 = vmatpush1.bf16.msra.mxu0 %v273
    %353 = vmatprep.subr.bf16.mxu0 %v278
    %354 = vmatpush1.bf16.msra.mxu0 %v277
    %355 = vmatprep.subr.bf16.mxu0 %v282
    %356 = vmatpush1.bf16.msra.mxu0 %v281
    %357 = vmatprep.subr.bf16.mxu0 %v286
    %358 = vmatpush1.bf16.msra.mxu0 %v285
    %359 = vmatprep.subr.bf16.mxu0 %v290
    %360 = vmatpush1.bf16.msra.mxu0 %v289
    %361 = vmatprep.subr.bf16.mxu0 %v294
    %362 = vmatpush1.bf16.msra.mxu0 %v293
    %363 = vmatprep.subr.bf16.mxu0 %v298
    %364 = vmatpush1.bf16.msra.mxu0 %v297
    %365 = vmatprep.subr.bf16.mxu0 0
    %366 = vmatpush1.bf16.msra.mxu0 0
    %367 = vmatprep.subr.bf16.mxu0 0
    %368 = vmatpush1.bf16.msra.mxu0 0
    %369 = vmatprep.subr.bf16.mxu0 0
    %370 = vmatpush1.bf16.msra.mxu0 0
    %371 = vmatprep.subr.bf16.mxu0 0
    %372 = vmatpush1.bf16.msra.mxu0 0
    %373 = vmatprep.subr.bf16.mxu0 0
    %374 = vmatpush1.bf16.msra.mxu0 0
    %375 = vmatprep.subr.bf16.mxu0 0
    %376 = vmatpush1.bf16.msra.mxu0 0
    %377 = vmatprep.mubr.bf16.mxu0 %v343
    %378 = vmatmul.mubr.bf16.gmra.mrb[0].mxu0 %v138
    %v379 = vpop.f32.mrb[0].mxu0
    %v380 = vadd.f32 0.0, %v379
    %v381 = vpop.f32.mrb[0].mxu0
    %v382 = vadd.f32 0.0, %v381
    %v383 = vpop.f32.mrb[0].mxu0
    %v384 = vadd.f32 0.0, %v383
    %v385 = vpop.f32.mrb[0].mxu0
    %v386 = vadd.f32 0.0, %v385
    %387 = vdwg.mxu0
    %388 = vmatprep.subr.bf16.mxu0 %v264
    %389 = vmatpush1.bf16.msra.mxu0 %v263
    %390 = vmatprep.subr.bf16.mxu0 %v268
    %391 = vmatpush1.bf16.msra.mxu0 %v267
    %392 = vmatprep.subr.bf16.mxu0 %v272
    %393 = vmatpush1.bf16.msra.mxu0 %v271
    %394 = vmatprep.subr.bf16.mxu0 %v276
    %395 = vmatpush1.bf16.msra.mxu0 %v275
    %396 = vmatprep.subr.bf16.mxu0 %v280
    %397 = vmatpush1.bf16.msra.mxu0 %v279
    %398 = vmatprep.subr.bf16.mxu0 %v284
    %399 = vmatpush1.bf16.msra.mxu0 %v283
    %400 = vmatprep.subr.bf16.mxu0 %v288
    %401 = vmatpush1.bf16.msra.mxu0 %v287
    %402 = vmatprep.subr.bf16.mxu0 %v292
    %403 = vmatpush1.bf16.msra.mxu0 %v291
    %404 = vmatprep.subr.bf16.mxu0 %v296
    %405 = vmatpush1.bf16.msra.mxu0 %v295
    %406 = vmatprep.subr.bf16.mxu0 %v300
    %407 = vmatpush1.bf16.msra.mxu0 %v299
    %408 = vmatprep.subr.bf16.mxu0 0
    %409 = vmatpush1.bf16.msra.mxu0 0
    %410 = vmatprep.subr.bf16.mxu0 0
    %411 = vmatpush1.bf16.msra.mxu0 0
    %412 = vmatprep.subr.bf16.mxu0 0
    %413 = vmatpush1.bf16.msra.mxu0 0
    %414 = vmatprep.subr.bf16.mxu0 0
    %415 = vmatpush1.bf16.msra.mxu0 0
    %416 = vmatprep.subr.bf16.mxu0 0
    %417 = vmatpush1.bf16.msra.mxu0 0
    %418 = vmatprep.subr.bf16.mxu0 0
    %419 = vmatpush1.bf16.msra.mxu0 0
    %420 = vmatprep.mubr.bf16.mxu0 %v343
    %421 = vmatmul.mubr.bf16.gmra.mrb[0].mxu0 %v138
    %v422 = vpop.f32.mrb[0].mxu0
    %v423 = vadd.f32 0.0, %v422
    %v424 = vpop.f32.mrb[0].mxu0
    %v425 = vadd.f32 0.0, %v424
    %v426 = vpop.f32.mrb[0].mxu0
    %v427 = vadd.f32 0.0, %v426
    %v428 = vpop.f32.mrb[0].mxu0
    %v429 = vadd.f32 0.0, %v428
    %430 = vdwg.mxu0
    %v431 = vld [vmem:[#allocation5] sm:$0xff]
    %v432 = vld [vmem:[#allocation5 + $0x8] sm:$0xff]
    %v433 = vld [vmem:[#allocation8] sm:$0xff]
    %v434 = vld [vmem:[#allocation8 + $0x8] sm:$0xff]
    %v435 = vld [vmem:[#allocation8 + $0x10] sm:$0xff]
    %v436 = vld [vmem:[#allocation8 + $0x18] sm:$0xff]
    %v437 = vld [vmem:[#allocation8 + $0x20] sm:$0xff]
    %v438 = vld [vmem:[#allocation8 + $0x28] sm:$0xff]
    %v439 = vld [vmem:[#allocation8 + $0x30] sm:$0xff]
    %v440 = vld [vmem:[#allocation8 + $0x38] sm:$0xff]
    %v441 = vld [vmem:[#allocation8 + $0x40] sm:$0xff]
    %v442 = vld [vmem:[#allocation8 + $0x48] sm:$0xff]
    %v443 = vld [vmem:[#allocation8 + $0x50] sm:$0xff]
    %v444 = vld [vmem:[#allocation8 + $0x58] sm:$0xff]
    %v445 = vld [vmem:[#allocation8 + $0x60] sm:$0xff]
    %v446 = vld [vmem:[#allocation8 + $0x68] sm:$0xff]
    %v447 = vld [vmem:[#allocation8 + $0x70] sm:$0xff]
    %v448 = vld [vmem:[#allocation8 + $0x78] sm:$0xff]
    %v449 = vld [vmem:[#allocation8 + $0x80] sm:$0xff]
    %v450 = vld [vmem:[#allocation8 + $0x88] sm:$0xff]
    %v451 = vld [vmem:[#allocation8 + $0x90] sm:$0xff]
    %v452 = vld [vmem:[#allocation8 + $0x98] sm:$0xff]
    %v453 = vld [vmem:[#allocation8 + $0xa0] sm:$0xff]
    %v454 = vld [vmem:[#allocation8 + $0xa8] sm:$0xff]
    %v455 = vld [vmem:[#allocation8 + $0xb0] sm:$0xff]
    %v456 = vld [vmem:[#allocation8 + $0xb8] sm:$0xff]
    %v457 = vld [vmem:[#allocation8 + $0xc0] sm:$0xff]
    %v458 = vld [vmem:[#allocation8 + $0xc8] sm:$0xff]
    %v459 = vld [vmem:[#allocation8 + $0xd0] sm:$0xff]
    %v460 = vld [vmem:[#allocation8 + $0xd8] sm:$0xff]
    %v461 = vld [vmem:[#allocation8 + $0xe0] sm:$0xff]
    %v462 = vld [vmem:[#allocation8 + $0xe8] sm:$0xff]
    %v463 = vld [vmem:[#allocation8 + $0xf0] sm:$0xff]
    %v464 = vld [vmem:[#allocation8 + $0xf8] sm:$0xff]
    %v465 = vld [vmem:[#allocation8 + $0x100] sm:$0xff]
    %v466 = vld [vmem:[#allocation8 + $0x108] sm:$0xff]
    %v467 = vld [vmem:[#allocation8 + $0x110] sm:$0xff]
    %v468 = vld [vmem:[#allocation8 + $0x118] sm:$0xff]
    %v469 = vld [vmem:[#allocation8 + $0x120] sm:$0xff]
    %v470 = vld [vmem:[#allocation8 + $0x128] sm:$0xff]
    %v471 = vld [vmem:[#allocation8 + $0x130] sm:$0xff]
    %v472 = vld [vmem:[#allocation8 + $0x138] sm:$0xff]
    %v475 = vunpack.c.l.b16 %v431
    %v476 = vunpack.c.h.b16 %v431
    %v477 = vunpack.c.l.b16 %v432
    %v478 = vunpack.c.h.b16 %v432
    %v479 = vpack.c.b16 %v477, %v475
    %v480 = vpack.c.b16 %v478, %v476
    %v522 = vunpack.c.l.b16 %v433
    %v523 = vunpack.c.h.b16 %v433
    %v524 = vunpack.c.l.b16 %v434
    %v525 = vunpack.c.h.b16 %v434
    %v526 = vunpack.c.l.b16 %v435
    %v527 = vunpack.c.h.b16 %v435
    %v528 = vunpack.c.l.b16 %v436
    %v529 = vunpack.c.h.b16 %v436
    %v530 = vunpack.c.l.b16 %v437
    %v531 = vunpack.c.h.b16 %v437
    %v532 = vunpack.c.l.b16 %v438
    %v533 = vunpack.c.h.b16 %v438
    %v534 = vunpack.c.l.b16 %v439
    %v535 = vunpack.c.h.b16 %v439
    %v536 = vunpack.c.l.b16 %v440
    %v537 = vunpack.c.h.b16 %v440
    %v538 = vunpack.c.l.b16 %v441
    %v539 = vunpack.c.h.b16 %v441
    %v540 = vunpack.c.l.b16 %v442
    %v541 = vunpack.c.h.b16 %v442
    %v542 = vunpack.c.l.b16 %v443
    %v543 = vunpack.c.h.b16 %v443
    %v544 = vunpack.c.l.b16 %v444
    %v545 = vunpack.c.h.b16 %v444
    %v546 = vunpack.c.l.b16 %v445
    %v547 = vunpack.c.h.b16 %v445
    %v548 = vunpack.c.l.b16 %v446
    %v549 = vunpack.c.h.b16 %v446
    %v550 = vunpack.c.l.b16 %v447
    %v551 = vunpack.c.h.b16 %v447
    %v552 = vunpack.c.l.b16 %v448
    %v553 = vunpack.c.h.b16 %v448
    %v554 = vunpack.c.l.b16 %v449
    %v555 = vunpack.c.h.b16 %v449
    %v556 = vunpack.c.l.b16 %v450
    %v557 = vunpack.c.h.b16 %v450
    %v558 = vunpack.c.l.b16 %v451
    %v559 = vunpack.c.h.b16 %v451
    %v560 = vunpack.c.l.b16 %v452
    %v561 = vunpack.c.h.b16 %v452
    %v562 = vunpack.c.l.b16 %v453
    %v563 = vunpack.c.h.b16 %v453
    %v564 = vunpack.c.l.b16 %v454
    %v565 = vunpack.c.h.b16 %v454
    %v566 = vunpack.c.l.b16 %v455
    %v567 = vunpack.c.h.b16 %v455
    %v568 = vunpack.c.l.b16 %v456
    %v569 = vunpack.c.h.b16 %v456
    %v570 = vunpack.c.l.b16 %v457
    %v571 = vunpack.c.h.b16 %v457
    %v572 = vunpack.c.l.b16 %v458
    %v573 = vunpack.c.h.b16 %v458
    %v574 = vunpack.c.l.b16 %v459
    %v575 = vunpack.c.h.b16 %v459
    %v576 = vunpack.c.l.b16 %v460
    %v577 = vunpack.c.h.b16 %v460
    %v578 = vunpack.c.l.b16 %v461
    %v579 = vunpack.c.h.b16 %v461
    %v580 = vunpack.c.l.b16 %v462
    %v581 = vunpack.c.h.b16 %v462
    %v582 = vunpack.c.l.b16 %v463
    %v583 = vunpack.c.h.b16 %v463
    %v584 = vunpack.c.l.b16 %v464
    %v585 = vunpack.c.h.b16 %v464
    %v586 = vunpack.c.l.b16 %v465
    %v587 = vunpack.c.h.b16 %v465
    %v588 = vunpack.c.l.b16 %v466
    %v589 = vunpack.c.h.b16 %v466
    %v590 = vunpack.c.l.b16 %v467
    %v591 = vunpack.c.h.b16 %v467
    %v592 = vunpack.c.l.b16 %v468
    %v593 = vunpack.c.h.b16 %v468
    %v594 = vunpack.c.l.b16 %v469
    %v595 = vunpack.c.h.b16 %v469
    %v596 = vunpack.c.l.b16 %v470
    %v597 = vunpack.c.h.b16 %v470
    %v598 = vunpack.c.l.b16 %v471
    %v599 = vunpack.c.h.b16 %v471
    %v600 = vunpack.c.l.b16 %v472
    %v601 = vunpack.c.h.b16 %v472
    %v602 = vpack.c.b16 %v526, %v522
    %v603 = vpack.c.b16 %v527, %v523
    %v604 = vpack.c.b16 %v528, %v524
    %v605 = vpack.c.b16 %v529, %v525
    %v606 = vpack.c.b16 %v534, %v530
    %v607 = vpack.c.b16 %v535, %v531
    %v608 = vpack.c.b16 %v536, %v532
    %v609 = vpack.c.b16 %v537, %v533
    %v610 = vpack.c.b16 %v542, %v538
    %v611 = vpack.c.b16 %v543, %v539
    %v612 = vpack.c.b16 %v544, %v540
    %v613 = vpack.c.b16 %v545, %v541
    %v614 = vpack.c.b16 %v550, %v546
    %v615 = vpack.c.b16 %v551, %v547
    %v616 = vpack.c.b16 %v552, %v548
    %v617 = vpack.c.b16 %v553, %v549
    %v618 = vpack.c.b16 %v558, %v554
    %v619 = vpack.c.b16 %v559, %v555
    %v620 = vpack.c.b16 %v560, %v556
    %v621 = vpack.c.b16 %v561, %v557
    %v622 = vpack.c.b16 %v566, %v562
    %v623 = vpack.c.b16 %v567, %v563
    %v624 = vpack.c.b16 %v568, %v564
    %v625 = vpack.c.b16 %v569, %v565
    %v626 = vpack.c.b16 %v574, %v570
    %v627 = vpack.c.b16 %v575, %v571
    %v628 = vpack.c.b16 %v576, %v572
    %v629 = vpack.c.b16 %v577, %v573
    %v630 = vpack.c.b16 %v582, %v578
    %v631 = vpack.c.b16 %v583, %v579
    %v632 = vpack.c.b16 %v584, %v580
    %v633 = vpack.c.b16 %v585, %v581
    %v634 = vpack.c.b16 %v590, %v586
    %v635 = vpack.c.b16 %v591, %v587
    %v636 = vpack.c.b16 %v592, %v588
    %v637 = vpack.c.b16 %v593, %v589
    %v638 = vpack.c.b16 %v598, %v594
    %v639 = vpack.c.b16 %v599, %v595
    %v640 = vpack.c.b16 %v600, %v596
    %v641 = vpack.c.b16 %v601, %v597
    %v683 = vsel %vm341, %v480, 0
    %685 = vmatprep.subr.bf16.mxu0 %v603
    %686 = vmatpush1.bf16.msra.mxu0 %v602
    %687 = vmatprep.subr.bf16.mxu0 %v607
    %688 = vmatpush1.bf16.msra.mxu0 %v606
    %689 = vmatprep.subr.bf16.mxu0 %v611
    %690 = vmatpush1.bf16.msra.mxu0 %v610
    %691 = vmatprep.subr.bf16.mxu0 %v615
    %692 = vmatpush1.bf16.msra.mxu0 %v614
    %693 = vmatprep.subr.bf16.mxu0 %v619
    %694 = vmatpush1.bf16.msra.mxu0 %v618
    %695 = vmatprep.subr.bf16.mxu0 %v623
    %696 = vmatpush1.bf16.msra.mxu0 %v622
    %697 = vmatprep.subr.bf16.mxu0 %v627
    %698 = vmatpush1.bf16.msra.mxu0 %v626
    %699 = vmatprep.subr.bf16.mxu0 %v631
    %700 = vmatpush1.bf16.msra.mxu0 %v630
    %701 = vmatprep.subr.bf16.mxu0 %v635
    %702 = vmatpush1.bf16.msra.mxu0 %v634
    %703 = vmatprep.subr.bf16.mxu0 %v639
    %704 = vmatpush1.bf16.msra.mxu0 %v638
    %705 = vmatprep.subr.bf16.mxu0 0
    %706 = vmatpush1.bf16.msra.mxu0 0
    %707 = vmatprep.subr.bf16.mxu0 0
    %708 = vmatpush1.bf16.msra.mxu0 0
    %709 = vmatprep.subr.bf16.mxu0 0
    %710 = vmatpush1.bf16.msra.mxu0 0
    %711 = vmatprep.subr.bf16.mxu0 0
    %712 = vmatpush1.bf16.msra.mxu0 0
    %713 = vmatprep.subr.bf16.mxu0 0
    %714 = vmatpush1.bf16.msra.mxu0 0
    %715 = vmatprep.subr.bf16.mxu0 0
    %716 = vmatpush1.bf16.msra.mxu0 0
    %717 = vmatprep.mubr.bf16.mxu0 %v683
    %718 = vmatmul.mubr.bf16.gmra.mrb[0].mxu0 %v479
    %v719 = vpop.f32.mrb[0].mxu0
    %v720 = vadd.f32 0.0, %v719
    %v721 = vpop.f32.mrb[0].mxu0
    %v722 = vadd.f32 0.0, %v721
    %v723 = vpop.f32.mrb[0].mxu0
    %v724 = vadd.f32 0.0, %v723
    %v725 = vpop.f32.mrb[0].mxu0
    %v726 = vadd.f32 0.0, %v725
    %727 = vdwg.mxu0
    %728 = vmatprep.subr.bf16.mxu0 %v605
    %729 = vmatpush1.bf16.msra.mxu0 %v604
    %730 = vmatprep.subr.bf16.mxu0 %v609
    %731 = vmatpush1.bf16.msra.mxu0 %v608
    %732 = vmatprep.subr.bf16.mxu0 %v613
    %733 = vmatpush1.bf16.msra.mxu0 %v612
    %734 = vmatprep.subr.bf16.mxu0 %v617
    %735 = vmatpush1.bf16.msra.mxu0 %v616
    %736 = vmatprep.subr.bf16.mxu0 %v621
    %737 = vmatpush1.bf16.msra.mxu0 %v620
    %738 = vmatprep.subr.bf16.mxu0 %v625
    %739 = vmatpush1.bf16.msra.mxu0 %v624
    %740 = vmatprep.subr.bf16.mxu0 %v629
    %741 = vmatpush1.bf16.msra.mxu0 %v628
    %742 = vmatprep.subr.bf16.mxu0 %v633
    %743 = vmatpush1.bf16.msra.mxu0 %v632
    %744 = vmatprep.subr.bf16.mxu0 %v637
    %745 = vmatpush1.bf16.msra.mxu0 %v636
    %746 = vmatprep.subr.bf16.mxu0 %v641
    %747 = vmatpush1.bf16.msra.mxu0 %v640
    %748 = vmatprep.subr.bf16.mxu0 0
    %749 = vmatpush1.bf16.msra.mxu0 0
    %750 = vmatprep.subr.bf16.mxu0 0
    %751 = vmatpush1.bf16.msra.mxu0 0
    %752 = vmatprep.subr.bf16.mxu0 0
    %753 = vmatpush1.bf16.msra.mxu0 0
    %754 = vmatprep.subr.bf16.mxu0 0
    %755 = vmatpush1.bf16.msra.mxu0 0
    %756 = vmatprep.subr.bf16.mxu0 0
    %757 = vmatpush1.bf16.msra.mxu0 0
    %758 = vmatprep.subr.bf16.mxu0 0
    %759 = vmatpush1.bf16.msra.mxu0 0
    %760 = vmatprep.mubr.bf16.mxu0 %v683
    %761 = vmatmul.mubr.bf16.gmra.mrb[0].mxu0 %v479
    %v762 = vpop.f32.mrb[0].mxu0
    %v763 = vadd.f32 0.0, %v762
    %v764 = vpop.f32.mrb[0].mxu0
    %v765 = vadd.f32 0.0, %v764
    %v766 = vpop.f32.mrb[0].mxu0
    %v767 = vadd.f32 0.0, %v766
    %v768 = vpop.f32.mrb[0].mxu0
    %v769 = vadd.f32 0.0, %v768
    %770 = vdwg.mxu0
    %v771 = vmul.f32 %v380, %v720
    %v772 = vmul.f32 %v382, %v722
    %v773 = vmul.f32 %v423, %v763
    %v774 = vmul.f32 %v425, %v765
    %v775 = vmul.f32 %v384, %v724
    %v776 = vmul.f32 %v386, %v726
    %v777 = vmul.f32 %v427, %v767
    %v778 = vmul.f32 %v429, %v769
    %v779 = vpack.c.bf16 %v775, %v771
    %v780 = vpack.c.bf16 %v776, %v772
    %v781 = vpack.c.bf16 %v777, %v773
    %v782 = vpack.c.bf16 %v778, %v774
    %v783 = vld [vmem:[#allocation10] sm:$0xf]
    %v784 = vld [vmem:[#allocation10 + $0x4] sm:$0xf]
    %v785 = vld [vmem:[#allocation10 + $0x8] sm:$0xf]
    %v786 = vld [vmem:[#allocation10 + $0xc] sm:$0xf]
    %v787 = vld [vmem:[#allocation10 + $0x10] sm:$0xf]
    %v788 = vld [vmem:[#allocation10 + $0x14] sm:$0xf]
    %v789 = vld [vmem:[#allocation10 + $0x18] sm:$0xf]
    %v790 = vld [vmem:[#allocation10 + $0x1c] sm:$0xf]
    %v791 = vld [vmem:[#allocation10 + $0x20] sm:$0xf]
    %v792 = vld [vmem:[#allocation10 + $0x24] sm:$0xf]
    %v793 = vld [vmem:[#allocation10 + $0x28] sm:$0xf]
    %v794 = vld [vmem:[#allocation10 + $0x2c] sm:$0xf]
    %v795 = vld [vmem:[#allocation10 + $0x30] sm:$0xf]
    %v796 = vld [vmem:[#allocation10 + $0x34] sm:$0xf]
    %v797 = vld [vmem:[#allocation10 + $0x38] sm:$0xf]
    %v798 = vld [vmem:[#allocation10 + $0x3c] sm:$0xf]
    %v799 = vld [vmem:[#allocation10 + $0x40] sm:$0xf]
    %v800 = vld [vmem:[#allocation10 + $0x44] sm:$0xf]
    %v801 = vld [vmem:[#allocation10 + $0x48] sm:$0xf]
    %v802 = vld [vmem:[#allocation10 + $0x4c] sm:$0xf]
    %v803 = vld [vmem:[#allocation10 + $0x50] sm:$0xf]
    %v804 = vld [vmem:[#allocation10 + $0x54] sm:$0xf]
    %v805 = vld [vmem:[#allocation10 + $0x58] sm:$0xf]
    %v806 = vld [vmem:[#allocation10 + $0x5c] sm:$0xf]
    %v807 = vld [vmem:[#allocation10 + $0x60] sm:$0xf]
    %v808 = vld [vmem:[#allocation10 + $0x64] sm:$0xf]
    %v809 = vld [vmem:[#allocation10 + $0x68] sm:$0xf]
    %v810 = vld [vmem:[#allocation10 + $0x6c] sm:$0xf]
    %v811 = vld [vmem:[#allocation10 + $0x70] sm:$0xf]
    %v812 = vld [vmem:[#allocation10 + $0x74] sm:$0xf]
    %v813 = vld [vmem:[#allocation10 + $0x78] sm:$0xf]
    %v814 = vld [vmem:[#allocation10 + $0x7c] sm:$0xf]
    %v815 = vld [vmem:[#allocation10 + $0x80] sm:$0xf]
    %v816 = vld [vmem:[#allocation10 + $0x84] sm:$0xf]
    %v817 = vld [vmem:[#allocation10 + $0x88] sm:$0xf]
    %v818 = vld [vmem:[#allocation10 + $0x8c] sm:$0xf]
    %v819 = vld [vmem:[#allocation10 + $0x90] sm:$0xf]
    %v820 = vld [vmem:[#allocation10 + $0x94] sm:$0xf]
    %v821 = vld [vmem:[#allocation10 + $0x98] sm:$0xf]
    %v822 = vld [vmem:[#allocation10 + $0x9c] sm:$0xf]
    %v823 = vld [vmem:[#allocation10 + $0xa0] sm:$0xf]
    %v824 = vld [vmem:[#allocation10 + $0xa4] sm:$0xf]
    %v825 = vld [vmem:[#allocation10 + $0xa8] sm:$0xf]
    %v826 = vld [vmem:[#allocation10 + $0xac] sm:$0xf]
    %v827 = vld [vmem:[#allocation10 + $0xb0] sm:$0xf]
    %v828 = vld [vmem:[#allocation10 + $0xb4] sm:$0xf]
    %v829 = vld [vmem:[#allocation10 + $0xb8] sm:$0xf]
    %v830 = vld [vmem:[#allocation10 + $0xbc] sm:$0xf]
    %v831 = vld [vmem:[#allocation10 + $0xc0] sm:$0xf]
    %v832 = vld [vmem:[#allocation10 + $0xc4] sm:$0xf]
    %v883 = vunpack.c.l.b16 %v783
    %v884 = vunpack.c.l.b16 %v784
    %v885 = vunpack.c.l.b16 %v785
    %v886 = vunpack.c.l.b16 %v786
    %v887 = vunpack.c.l.b16 %v787
    %v888 = vunpack.c.l.b16 %v788
    %v889 = vunpack.c.l.b16 %v789
    %v890 = vunpack.c.l.b16 %v790
    %v891 = vunpack.c.l.b16 %v791
    %v892 = vunpack.c.l.b16 %v792
    %v893 = vunpack.c.l.b16 %v793
    %v894 = vunpack.c.l.b16 %v794
    %v895 = vunpack.c.l.b16 %v795
    %v896 = vunpack.c.l.b16 %v796
    %v897 = vunpack.c.l.b16 %v797
    %v898 = vunpack.c.l.b16 %v798
    %v899 = vunpack.c.l.b16 %v799
    %v900 = vunpack.c.l.b16 %v800
    %v901 = vunpack.c.l.b16 %v801
    %v902 = vunpack.c.l.b16 %v802
    %v903 = vunpack.c.l.b16 %v803
    %v904 = vunpack.c.l.b16 %v804
    %v905 = vunpack.c.l.b16 %v805
    %v906 = vunpack.c.l.b16 %v806
    %v907 = vunpack.c.l.b16 %v807
    %v908 = vunpack.c.l.b16 %v808
    %v909 = vunpack.c.l.b16 %v809
    %v910 = vunpack.c.l.b16 %v810
    %v911 = vunpack.c.l.b16 %v811
    %v912 = vunpack.c.l.b16 %v812
    %v913 = vunpack.c.l.b16 %v813
    %v914 = vunpack.c.l.b16 %v814
    %v915 = vunpack.c.l.b16 %v815
    %v916 = vunpack.c.l.b16 %v816
    %v917 = vunpack.c.l.b16 %v817
    %v918 = vunpack.c.l.b16 %v818
    %v919 = vunpack.c.l.b16 %v819
    %v920 = vunpack.c.l.b16 %v820
    %v921 = vunpack.c.l.b16 %v821
    %v922 = vunpack.c.l.b16 %v822
    %v923 = vunpack.c.l.b16 %v823
    %v924 = vunpack.c.l.b16 %v824
    %v925 = vunpack.c.l.b16 %v825
    %v926 = vunpack.c.l.b16 %v826
    %v927 = vunpack.c.l.b16 %v827
    %v928 = vunpack.c.l.b16 %v828
    %v929 = vunpack.c.l.b16 %v829
    %v930 = vunpack.c.l.b16 %v830
    %v931 = vunpack.c.l.b16 %v831
    %v932 = vunpack.c.l.b16 %v832
    %v933 = vpack.c.b16 %v884, %v883
    %v934 = vpack.c.b16 %v886, %v885
    %v935 = vpack.c.b16 %v888, %v887
    %v936 = vpack.c.b16 %v890, %v889
    %v937 = vpack.c.b16 %v892, %v891
    %v938 = vpack.c.b16 %v894, %v893
    %v939 = vpack.c.b16 %v896, %v895
    %v940 = vpack.c.b16 %v898, %v897
    %v941 = vpack.c.b16 %v900, %v899
    %v942 = vpack.c.b16 %v902, %v901
    %v943 = vpack.c.b16 %v904, %v903
    %v944 = vpack.c.b16 %v906, %v905
    %v945 = vpack.c.b16 %v908, %v907
    %v946 = vpack.c.b16 %v910, %v909
    %v947 = vpack.c.b16 %v912, %v911
    %v948 = vpack.c.b16 %v914, %v913
    %v949 = vpack.c.b16 %v916, %v915
    %v950 = vpack.c.b16 %v918, %v917
    %v951 = vpack.c.b16 %v920, %v919
    %v952 = vpack.c.b16 %v922, %v921
    %v953 = vpack.c.b16 %v924, %v923
    %v954 = vpack.c.b16 %v926, %v925
    %v955 = vpack.c.b16 %v928, %v927
    %v956 = vpack.c.b16 %v930, %v929
    %v957 = vpack.c.b16 %v932, %v931
    %vm983 = vcmask 130048
    %v985 = vsel %vm983, %v782, 0
    %987 = vmatprep.subr.bf16.mxu0 0
    %988 = vmatpush1.bf16.msra.mxu0 %v933
    %989 = vmatprep.subr.bf16.mxu0 0
    %990 = vmatpush1.bf16.msra.mxu0 %v934
    %991 = vmatprep.subr.bf16.mxu0 0
    %992 = vmatpush1.bf16.msra.mxu0 %v935
    %993 = vmatprep.subr.bf16.mxu0 0
    %994 = vmatpush1.bf16.msra.mxu0 %v936
    %995 = vmatprep.subr.bf16.mxu0 0
    %996 = vmatpush1.bf16.msra.mxu0 %v937
    %997 = vmatprep.subr.bf16.mxu0 0
    %998 = vmatpush1.bf16.msra.mxu0 %v938
    %999 = vmatprep.subr.bf16.mxu0 0
    %1000 = vmatpush1.bf16.msra.mxu0 %v939
    %1001 = vmatprep.subr.bf16.mxu0 0
    %1002 = vmatpush1.bf16.msra.mxu0 %v940
    %1003 = vmatprep.subr.bf16.mxu0 0
    %1004 = vmatpush1.bf16.msra.mxu0 %v941
    %1005 = vmatprep.subr.bf16.mxu0 0
    %1006 = vmatpush1.bf16.msra.mxu0 %v942
    %1007 = vmatprep.subr.bf16.mxu0 0
    %1008 = vmatpush1.bf16.msra.mxu0 %v943
    %1009 = vmatprep.subr.bf16.mxu0 0
    %1010 = vmatpush1.bf16.msra.mxu0 %v944
    %1011 = vmatprep.subr.bf16.mxu0 0
    %1012 = vmatpush1.bf16.msra.mxu0 %v945
    %1013 = vmatprep.subr.bf16.mxu0 0
    %1014 = vmatpush1.bf16.msra.mxu0 %v946
    %1015 = vmatprep.subr.bf16.mxu0 0
    %1016 = vmatpush1.bf16.msra.mxu0 %v947
    %1017 = vmatprep.subr.bf16.mxu0 0
    %1018 = vmatpush1.bf16.msra.mxu0 %v948
    %1019 = vmatprep.mubr.bf16.mxu0 %v780
    %1020 = vmatmul.mubr.bf16.gmra.mrb[0].mxu0 %v779
    %v1021 = vpop.f32.mrb[0].mxu0
    %v1022 = vadd.f32 0.0, %v1021
    %v1023 = vpop.f32.mrb[0].mxu0
    %v1024 = vpop.f32.mrb[0].mxu0
    %v1025 = vadd.f32 0.0, %v1024
    %v1026 = vpop.f32.mrb[0].mxu0
    %1027 = vdwg.mxu0
    %1028 = vmatprep.subr.bf16.mxu0 0
    %1029 = vmatpush1.bf16.msra.mxu0 %v949
    %1030 = vmatprep.subr.bf16.mxu0 0
    %1031 = vmatpush1.bf16.msra.mxu0 %v950
    %1032 = vmatprep.subr.bf16.mxu0 0
    %1033 = vmatpush1.bf16.msra.mxu0 %v951
    %1034 = vmatprep.subr.bf16.mxu0 0
    %1035 = vmatpush1.bf16.msra.mxu0 %v952
    %1036 = vmatprep.subr.bf16.mxu0 0
    %1037 = vmatpush1.bf16.msra.mxu0 %v953
    %1038 = vmatprep.subr.bf16.mxu0 0
    %1039 = vmatpush1.bf16.msra.mxu0 %v954
    %1040 = vmatprep.subr.bf16.mxu0 0
    %1041 = vmatpush1.bf16.msra.mxu0 %v955
    %1042 = vmatprep.subr.bf16.mxu0 0
    %1043 = vmatpush1.bf16.msra.mxu0 %v956
    %1044 = vmatprep.subr.bf16.mxu0 0
    %1045 = vmatpush1.bf16.msra.mxu0 %v957
    %1046 = vmatprep.subr.bf16.mxu0 0
    %1047 = vmatpush1.bf16.msra.mxu0 0
    %1048 = vmatprep.subr.bf16.mxu0 0
    %1049 = vmatpush1.bf16.msra.mxu0 0
    %1050 = vmatprep.subr.bf16.mxu0 0
    %1051 = vmatpush1.bf16.msra.mxu0 0
    %1052 = vmatprep.subr.bf16.mxu0 0
    %1053 = vmatpush1.bf16.msra.mxu0 0
    %1054 = vmatprep.subr.bf16.mxu0 0
    %1055 = vmatpush1.bf16.msra.mxu0 0
    %1056 = vmatprep.subr.bf16.mxu0 0
    %1057 = vmatpush1.bf16.msra.mxu0 0
    %1058 = vmatprep.subr.bf16.mxu0 0
    %1059 = vmatpush1.bf16.msra.mxu0 0
    %1060 = vmatprep.mubr.bf16.mxu0 %v985
    %1061 = vmatmul.mubr.bf16.gmra.mrb[0].mxu0 %v781
    %v1062 = vpop.f32.mrb[0].mxu0
    %v1063 = vadd.f32 %v1022, %v1062
    %v1064 = vpop.f32.mrb[0].mxu0
    %v1065 = vpop.f32.mrb[0].mxu0
    %v1066 = vadd.f32 %v1025, %v1065
    %v1067 = vpop.f32.mrb[0].mxu0
    %1068 = vdwg.mxu0
    %1069 = vst [vmem:[#allocation11] sm:$0xff] %v1063
    %1070 = vst [vmem:[#allocation11 + $0x8] sm:$0xff] %v1066
    // Predicated region
    $region42: #{tpu_custom_call.1} parent=1 // pred_check
      _
    $region43: #{tpu_custom_call.1} parent=1 // pred_check_branch
      %1072 = sbr.rel (0) target = $region45
    $region44: #{tpu_custom_call.1} parent=1 // pred_region
      %s1074 = ssub.s32 256, 256
      %1075 = vsyncadd [#allocation4], %s1074
      %s1076 = sshll.u32 [#allocation11], 4
      %s1077 = int_to_ptr.vmem [resolvable:$true] %s1076
      %1082 = dma.vmem_to_hbm [thread:$0]  %s1077, 256, %s5, [#allocation4], 128, 128, 8
    $region45: #{tpu_custom_call.1} parent=1 // pred_fallthru
      _
    // Predicated region
    $region46: #{tpu_custom_call.1} parent=1 // pred_check
      _
    $region47: #{tpu_custom_call.1} parent=1 // pred_check_branch
      %1084 = sbr.rel (0) target = $region49
    $region48: #{tpu_custom_call.1} parent=1 // pred_region
      %1085 = dma.done [#allocation4], 256
    $region49: #{tpu_custom_call.1} parent=1 // pred_fallthru
      _
    %1086 = vsyncpa [#allocation3], 1
    %1087 = vsyncpa [#allocation6], 1
    %1088 = vsyncpa [#allocation9], 1
    %1089 = vsyncpa [#allocation4], 1

</llo_original>
